<compile_context>
chip_gen: v7x
topology: tpu7x:2x2x1
jax: 0.10.0
libtpu: 0.0.40
codegen_flags: <defaults>
</compile_context>

<pallas_src>
import functools

import jax
import jax.numpy as jnp
from jax.experimental import pallas as pl
from jax.experimental.pallas import tpu as pltpu

DOF = 3
STATE_DIM = DOF * 2        # env.observation_space.shape[0] == 6
ACTION_DIM = DOF           # env.action_space.shape[0]      == 3
HIDDEN_DIM = (32, 32)      # hidden_dim list passed to the module

LANE = 128                 # TPU lane width; batch tiles are multiples of this
MAX_TILE = 32768           # cap so VMEM stays well under v7x's 32 MiB scoped


def _round_up(v, m):
    return ((v + m - 1) // m) * m


def _make_qnet_kernel(n_hidden):
    """MLP with n_hidden (Linear + shared PReLU) blocks + fc_out, batch on lanes."""

    def kernel(*refs):
        # refs = (alpha, xa_packed, w1_aug, [w_i, b_i]..., w_out, b_out, out)
        alpha_ref, xa_ref, w1_ref = refs[0], refs[1], refs[2]
        hidden_refs = refs[3:3 + 2 * (n_hidden - 1)]
        w_out_ref = refs[3 + 2 * (n_hidden - 1)]
        b_out_ref = refs[4 + 2 * (n_hidden - 1)]
        out_ref = refs[-1]

        alpha = alpha_ref[0, 0]  # shared PReLU slope, read once from SMEM

        # Layer 1, concat + bias fused into a single MXU matmul:
        #   h^T = [W1 | b1] @ [x^T ; a^T ; 1]        -> (H1, TILE_B)
        h = jnp.dot(w1_ref[...], xa_ref[...], preferred_element_type=jnp.float32)
        h = h * jnp.where(h > 0, 1.0, alpha)          # PReLU (lane-dense)

        for i in range(n_hidden - 1):
            w = hidden_refs[2 * i][...]               # (H_{i+1}, H_i)
            b = hidden_refs[2 * i + 1][...]           # (H_{i+1}, 1)
            h = jnp.dot(w, h, preferred_element_type=jnp.float32) + b
            h = h * jnp.where(h > 0, 1.0, alpha)

        # fc_out: (1, H) @ (H, TILE_B) -> lane-dense (1, TILE_B) store
        out_ref[...] = (
            jnp.dot(w_out_ref[...], h, preferred_element_type=jnp.float32)
            + b_out_ref[...]
        ).astype(out_ref.dtype)

    return kernel


@functools.partial(jax.jit, static_argnames=("n_hidden", "max_tile"))
def qvalue_forward(x, a, alpha, params, *, n_hidden, max_tile=MAX_TILE):
    """x: (B, state_dim), a: (B, action_dim), alpha: (1,1) PReLU slope.

    params = (w1_aug, w2, b2, ..., wN, bN, w_out, b_out) where w1_aug is the
    first Linear's weight with its bias appended as a final column
    (H1, S+A+1); other weights are PyTorch (out, in), biases (out, 1).
    """
    batch, state_dim = x.shape
    action_dim = a.shape[1]
    feat = state_dim + action_dim + 1                # +1 for the ones row

    # --- step-count-driven tile choice -----------------------------------
    # grid >= 2 and even (both v7x TensorCores busy), tile <= max_tile, and
    # padding limited to at most one lane-tile beyond the batch.
    padded_lane = _round_up(batch, LANE)
    grid_n = max(2, pl.cdiv(padded_lane, max_tile))
    if grid_n % 2:
        grid_n += 1
    eff_tile = _round_up(pl.cdiv(padded_lane, grid_n), LANE)
    padded = eff_tile * grid_n
    grid = (grid_n,)

    # --- single host-side packing fusion ---------------------------------
    # One fusion: concat features + ones row, transpose to batch-on-lanes,
    # pad to the tiled width.  (Padding columns get 0 in the ones row too;
    # their garbage outputs are sliced off below.)
    ones = jnp.ones((batch, 1), jnp.float32)
    xa_t = jnp.concatenate([x, a, ones], axis=1).T   # (feat, batch)
    if padded != batch:
        xa_t = jnp.pad(xa_t, ((0, 0), (0, padded - batch)))

    smem_spec = pl.BlockSpec((1, 1), lambda i: (0, 0),
                             memory_space=pltpu.MemorySpace.SMEM)
    xa_spec = pl.BlockSpec((feat, eff_tile), lambda i: (0, i))
    # Constant index_map -> weights/biases stay resident in VMEM across steps.
    w_specs = [pl.BlockSpec(p.shape, lambda i: (0, 0)) for p in params]
    out_spec = pl.BlockSpec((1, eff_tile), lambda i: (0, i))

    # Advisory cost estimate (amortizes the fixed pallas_call overhead hint).
    layer_sizes = [state_dim + action_dim, params[0].shape[0]]
    for i in range(n_hidden - 1):
        layer_sizes.append(params[1 + 2 * i].shape[0])
    layer_sizes.append(1)
    flops = 2 * padded * sum(layer_sizes[i] * layer_sizes[i + 1]
                             for i in range(len(layer_sizes) - 1))
    param_bytes = sum(int(p.size) * p.dtype.itemsize for p in params)
    bytes_accessed = 4 * padded * (feat + 1) + param_bytes
    cost = pl.CostEstimate(flops=flops, transcendentals=0,
                           bytes_accessed=bytes_accessed)

    out = pl.pallas_call(
        _make_qnet_kernel(n_hidden),
        out_shape=jax.ShapeDtypeStruct((1, padded), jnp.float32),
        grid_spec=pltpu.PrefetchScalarGridSpec(
            num_scalar_prefetch=0,
            grid=grid,
            in_specs=[smem_spec, xa_spec] + w_specs,
            out_specs=out_spec,
        ),
        compiler_params=pltpu.CompilerParams(
            dimension_semantics=("parallel",)),   # megacore on v7x
        cost_estimate=cost,
    )(alpha, xa_t, *params)

    return out[0, :batch].reshape(batch, 1)


def init_params(key, state_dim, hidden_dim, action_dim):
    """PyTorch-style nn.Linear init; first layer's bias folded into its weight."""
    params = []
    prev = state_dim + action_dim
    sizes = list(hidden_dim) + [1]
    for li, layer_size in enumerate(sizes):
        key, kw, kb = jax.random.split(key, 3)
        bound = 1.0 / float(prev) ** 0.5
        w = jax.random.uniform(kw, (layer_size, prev), jnp.float32, -bound, bound)
        b = jax.random.uniform(kb, (layer_size, 1), jnp.float32, -bound, bound)
        if li == 0:
            params.append(jnp.concatenate([w, b], axis=1))  # [W1 | b1]
        else:
            params.extend([w, b])
        prev = layer_size
    alpha = jnp.array([[0.25]], dtype=jnp.float32)  # PReLU default weight
    return alpha, tuple(params)


def reference_forward(x, a, alpha, params, n_hidden):
    """Pure-JAX reference matching the PyTorch forward semantics."""
    al = alpha[0, 0]
    h = jnp.concatenate([x, a], axis=1)
    w1, b1 = params[0][:, :-1], params[0][:, -1]     # un-fold first-layer bias
    h = h @ w1.T + b1
    h = jnp.where(h > 0, h, al * h)
    idx = 1
    for _ in range(n_hidden - 1):
        w, b = params[idx], params[idx + 1]
        idx += 2
        h = h @ w.T + b[:, 0]
        h = jnp.where(h > 0, h, al * h)
    w_out, b_out = params[idx], params[idx + 1]
    return h @ w_out.T + b_out[:, 0]


if __name__ == "__main__":
    key = jax.random.PRNGKey(0)
    k_param, kx, ka, kx2, ka2 = jax.random.split(key, 5)

    n_hidden = len(HIDDEN_DIM)
    alpha, params = init_params(k_param, STATE_DIM, HIDDEN_DIM, ACTION_DIM)

    # Small case consistent with the module's typical usage (batch=2).
    batch = 2
    x = jax.random.normal(kx, (batch, STATE_DIM), dtype=jnp.float32)
    a = jax.random.uniform(ka, (batch, ACTION_DIM), jnp.float32, -1.0, 1.0)

    out = qvalue_forward(x, a, alpha, params, n_hidden=n_hidden)
    out = jax.block_until_ready(out)
    ref = reference_forward(x, a, alpha, params, n_hidden)
    assert out.shape == (batch, 1), out.shape
    assert jnp.allclose(out, ref.reshape(batch, 1), atol=1e-4, rtol=1e-4), (out, ref)

    # Ragged / multi-tile path: batch not a multiple of the lane-aligned tile,
    # small max_tile forces a >2-step grid.
    batch2 = 260
    x2 = jax.random.normal(kx2, (batch2, STATE_DIM), dtype=jnp.float32)
    a2 = jax.random.uniform(ka2, (batch2, ACTION_DIM), jnp.float32, -1.0, 1.0)
    out2 = qvalue_forward(x2, a2, alpha, params, n_hidden=n_hidden, max_tile=128)
    out2 = jax.block_until_ready(out2)
    ref2 = reference_forward(x2, a2, alpha, params, n_hidden)
    assert out2.shape == (batch2, 1), out2.shape
    assert jnp.allclose(out2, ref2.reshape(batch2, 1), atol=1e-4, rtol=1e-4)

    print("KERNEL_OK")
</pallas_src>

<mosaic_0001>
module attributes {stable_mosaic.version = 11 : i64} {
  func.func @kernel(%arg0: i32, %arg1: memref<1x1xf32, #tpu.memory_space<smem>>, %arg2: memref<10x128xf32, #tpu.memory_space<vmem>>, %arg3: memref<32x10xf32, #tpu.memory_space<vmem>>, %arg4: memref<32x32xf32, #tpu.memory_space<vmem>>, %arg5: memref<32x1xf32, #tpu.memory_space<vmem>>, %arg6: memref<1x32xf32, #tpu.memory_space<vmem>>, %arg7: memref<1x1xf32, #tpu.memory_space<vmem>>, %arg8: memref<1x128xf32, #tpu.memory_space<vmem>>) attributes {dimension_semantics = [#tpu.dimension_semantics<parallel>], iteration_bounds = array<i64: 2>, scalar_prefetch = 0 : i64, scratch_operands = 0 : i64, tpu.core_type = #tpu.core_type<tc>, window_params = [{transform_indices = @transform_0, window_bounds = array<i64: 1, 1>}, {transform_indices = @transform_1, window_bounds = array<i64: 10, 128>}, {pipeline_mode = #tpu.pipeline_mode<synchronous>, transform_indices = @transform_2, window_bounds = array<i64: 32, 10>}, {pipeline_mode = #tpu.pipeline_mode<synchronous>, transform_indices = @transform_3, window_bounds = array<i64: 32, 32>}, {pipeline_mode = #tpu.pipeline_mode<synchronous>, transform_indices = @transform_4, window_bounds = array<i64: 32, 1>}, {pipeline_mode = #tpu.pipeline_mode<synchronous>, transform_indices = @transform_5, window_bounds = array<i64: 1, 32>}, {pipeline_mode = #tpu.pipeline_mode<synchronous>, transform_indices = @transform_6, window_bounds = array<i64: 1, 1>}, {transform_indices = @transform_7, window_bounds = array<i64: 1, 128>}]} {
    %c0 = arith.constant 0 : index
    %c0_0 = arith.constant 0 : index
    %0 = memref.load %arg1[%c0, %c0_0] : memref<1x1xf32, #tpu.memory_space<smem>>
    %c0_1 = arith.constant 0 : index
    %c0_2 = arith.constant 0 : index
    %1 = vector.load %arg3[%c0_1, %c0_2] : memref<32x10xf32, #tpu.memory_space<vmem>>, vector<32x10xf32>
    %c0_3 = arith.constant 0 : index
    %c0_4 = arith.constant 0 : index
    %2 = vector.load %arg2[%c0_3, %c0_4] : memref<10x128xf32, #tpu.memory_space<vmem>>, vector<10x128xf32>
    %cst = arith.constant dense<0.000000e+00> : vector<32x128xf32>
    %3 = tpu.matmul %1, %2, %cst {dimension_numbers = #tpu.dot_dimension_numbers<[1], [0], [0], [1], [0, 0, 1, 1], [], []>} : vector<32x10xf32>, vector<10x128xf32>, vector<32x128xf32> -> vector<32x128xf32>
    %cst_5 = arith.constant 0.000000e+00 : f32
    %4 = vector.broadcast %cst_5 : f32 to vector<32x128xf32>
    %5 = arith.cmpf ogt, %3, %4 : vector<32x128xf32>
    %cst_6 = arith.constant 1.000000e+00 : f32
    %6 = vector.broadcast %cst_6 : f32 to vector<32x128xf32>
    %7 = vector.broadcast %0 : f32 to vector<32x128xf32>
    %8 = arith.select %5, %6, %7 : vector<32x128xi1>, vector<32x128xf32>
    %9 = arith.mulf %3, %8 : vector<32x128xf32>
    %c0_7 = arith.constant 0 : index
    %c0_8 = arith.constant 0 : index
    %10 = vector.load %arg4[%c0_7, %c0_8] : memref<32x32xf32, #tpu.memory_space<vmem>>, vector<32x32xf32>
    %c0_9 = arith.constant 0 : index
    %c0_10 = arith.constant 0 : index
    %11 = vector.load %arg5[%c0_9, %c0_10] : memref<32x1xf32, #tpu.memory_space<vmem>>, vector<32x1xf32>
    %cst_11 = arith.constant dense<0.000000e+00> : vector<32x128xf32>
    %12 = tpu.matmul %10, %9, %cst_11 {dimension_numbers = #tpu.dot_dimension_numbers<[1], [0], [0], [1], [0, 0, 1, 1], [], []>} : vector<32x32xf32>, vector<32x128xf32>, vector<32x128xf32> -> vector<32x128xf32>
    %13 = vector.broadcast %11 : vector<32x1xf32> to vector<32x128xf32>
    %14 = arith.addf %12, %13 : vector<32x128xf32>
    %cst_12 = arith.constant 0.000000e+00 : f32
    %15 = vector.broadcast %cst_12 : f32 to vector<32x128xf32>
    %16 = arith.cmpf ogt, %14, %15 : vector<32x128xf32>
    %cst_13 = arith.constant 1.000000e+00 : f32
    %17 = vector.broadcast %cst_13 : f32 to vector<32x128xf32>
    %18 = vector.broadcast %0 : f32 to vector<32x128xf32>
    %19 = arith.select %16, %17, %18 : vector<32x128xi1>, vector<32x128xf32>
    %20 = arith.mulf %14, %19 : vector<32x128xf32>
    %c0_14 = arith.constant 0 : index
    %c0_15 = arith.constant 0 : index
    %21 = vector.load %arg6[%c0_14, %c0_15] : memref<1x32xf32, #tpu.memory_space<vmem>>, vector<1x32xf32>
    %cst_16 = arith.constant dense<0.000000e+00> : vector<1x128xf32>
    %22 = tpu.matmul %21, %20, %cst_16 {dimension_numbers = #tpu.dot_dimension_numbers<[1], [0], [0], [1], [0, 0, 1, 1], [], []>} : vector<1x32xf32>, vector<32x128xf32>, vector<1x128xf32> -> vector<1x128xf32>
    %c0_17 = arith.constant 0 : index
    %c0_18 = arith.constant 0 : index
    %23 = vector.load %arg7[%c0_17, %c0_18] : memref<1x1xf32, #tpu.memory_space<vmem>>, vector<1x1xf32>
    %24 = vector.broadcast %23 : vector<1x1xf32> to vector<1x128xf32>
    %25 = arith.addf %22, %24 : vector<1x128xf32>
    %c0_19 = arith.constant 0 : index
    %c0_20 = arith.constant 0 : index
    %26 = vector.load %arg8[%c0_19, %c0_20] : memref<1x128xf32, #tpu.memory_space<vmem>>, vector<1x128xf32>
    tpu.vector_store %arg8[%c0_19, %c0_20], %25 {strides = array<i32>} : memref<1x128xf32, #tpu.memory_space<vmem>>, vector<1x128xf32>,
    return
  }
  func.func @transform_0(%arg0: i32) -> (i32, i32) {
    %c0_i32 = arith.constant 0 : i32
    %c0_i32_0 = arith.constant 0 : i32
    %c0_i32_1 = arith.constant 0 : i32
    return %c0_i32, %c0_i32_0 : i32, i32
  }
  func.func @transform_1(%arg0: i32) -> (i32, i32) {
    %c0_i32 = arith.constant 0 : i32
    %c0_i32_0 = arith.constant 0 : i32
    return %c0_i32, %arg0 : i32, i32
  }
  func.func @transform_2(%arg0: i32) -> (i32, i32) {
    %c0_i32 = arith.constant 0 : i32
    %c0_i32_0 = arith.constant 0 : i32
    %c0_i32_1 = arith.constant 0 : i32
    return %c0_i32, %c0_i32_0 : i32, i32
  }
  func.func @transform_3(%arg0: i32) -> (i32, i32) {
    %c0_i32 = arith.constant 0 : i32
    %c0_i32_0 = arith.constant 0 : i32
    %c0_i32_1 = arith.constant 0 : i32
    return %c0_i32, %c0_i32_0 : i32, i32
  }
  func.func @transform_4(%arg0: i32) -> (i32, i32) {
    %c0_i32 = arith.constant 0 : i32
    %c0_i32_0 = arith.constant 0 : i32
    %c0_i32_1 = arith.constant 0 : i32
    return %c0_i32, %c0_i32_0 : i32, i32
  }
  func.func @transform_5(%arg0: i32) -> (i32, i32) {
    %c0_i32 = arith.constant 0 : i32
    %c0_i32_0 = arith.constant 0 : i32
    %c0_i32_1 = arith.constant 0 : i32
    return %c0_i32, %c0_i32_0 : i32, i32
  }
  func.func @transform_6(%arg0: i32) -> (i32, i32) {
    %c0_i32 = arith.constant 0 : i32
    %c0_i32_0 = arith.constant 0 : i32
    %c0_i32_1 = arith.constant 0 : i32
    return %c0_i32, %c0_i32_0 : i32, i32
  }
  func.func @transform_7(%arg0: i32) -> (i32, i32) {
    %c0_i32 = arith.constant 0 : i32
    %c0_i32_0 = arith.constant 0 : i32
    return %c0_i32, %arg0 : i32, i32
  }
}

</mosaic_0001>

<llo_original>
// kernel: qvalue_forward.1
$region0: #{qvalue_forward.1}
  #allocation0 [shape = 'u32[]', space=smem, size = 0x4, offset = 0x4, fixed_abs, tag = 'smem constant byte address 0x4 - core index']
  #allocation1 [shape = 'u32[144,128]{1,0:T(1,128)}', space=vmem, size = 0x12000, scoped, tag = 'internal scratch']
  #allocation2 [shape = 'f32[1,1]{1,0:T(1,128)S(6)}', space=smem, size = 0x200, scoped, tag = 'scoped memory for qvalue_forward.1']
  #allocation3 [shape = 'f32[1,1]{1,0:T(1,128)S(1)}', space=vmem, size = 0x200, scoped, tag = 'scoped memory for qvalue_forward.1']
  %s0 = inlined_call_operand.<no memory space> [shape: f32[1,1], index: 0, kind: input, shape index: {}]
  %s1 = inlined_call_operand.vmem [shape: f32[10,256], index: 1, kind: input, shape index: {}]
  %s2 = inlined_call_operand.vmem [shape: f32[32,10], index: 2, kind: input, shape index: {}]
  %s3 = inlined_call_operand.vmem [shape: f32[32,32], index: 3, kind: input, shape index: {}]
  %s4 = inlined_call_operand.vmem [shape: f32[32,1], index: 4, kind: input, shape index: {}]
  %s5 = inlined_call_operand.vmem [shape: f32[1,32], index: 5, kind: input, shape index: {}]
  %s6 = inlined_call_operand.<no memory space> [shape: f32[1,1], index: 6, kind: input, shape index: {}]
  %s7 = inlined_call_operand.vmem [shape: f32[1,256], index: 7, kind: output, shape index: {}]
  %s8 = sld [smem:[#allocation0]]
  $region99: #{qvalue_forward.1} parent=0
    _
  %s10 = ssub.s32 1, %s8
  %s11 = scalar_select 0, %s10, %s8
  %12 = sst [smem:[#allocation2]] %s0
  %v13 = vstv %s6
  %14 = vst [vmem:[#allocation3] sm:$0x1] %v13
  $region1: #{qvalue_forward.1} parent=0
    #allocation4 [shape = 'u8[16384]{0}', space=vmem, size = 0x4000, scoped, tag = 'input window, operand 1']
    loop: start=0, step=1, limit=4
    $region2: #{qvalue_forward.1} parent=1 // loop_pre_header
      _
    $region3: #{qvalue_forward.1} parent=1 // loop_header
      %s16 = sphi 0, %s20
      %p17 = scmp.ge.s32.totalorder %s16, 4
      %s24 = sphi 0, %s24
      %s26 = sphi 0, %s24
      %s27 = sphi 0, %s26
      %s41 = sphi 0, %s27
      %s47 = sphi 0, %s49
      %s50 = sphi 0, %s47
      %s51 = sphi 0, %s50
      %s67 = sphi 0, %s51
      %s71 = sphi 0, %s71
      %s73 = sphi 0, %s71
      %s74 = sphi 0, %s73
      %s88 = sphi 0, %s74
      %s92 = sphi 0, %s92
      %s94 = sphi 0, %s92
      %s95 = sphi 0, %s94
      %s109 = sphi 0, %s95
      %s113 = sphi 0, %s113
      %s115 = sphi 0, %s113
      %s116 = sphi 0, %s115
      %s130 = sphi 0, %s116
      %s134 = sphi 0, %s134
      %s136 = sphi 0, %s134
      %s137 = sphi 0, %s136
      %s151 = sphi 0, %s137
      %s155 = sphi 0, %s155
      %s157 = sphi 0, %s155
      %s158 = sphi 0, %s157
      %s172 = sphi 0, %s158
      %s178 = sphi 0, %s180
      %s181 = sphi 0, %s178
      %s182 = sphi 0, %s181
      %s198 = sphi 0, %s182
    $region4: #{qvalue_forward.1} parent=1 // loop_header_branch
      %19 = sbr.rel (%p17) target = $region8
    $region5: #{qvalue_forward.1} parent=1 // loop_body
      %s21 = ssub.s32 %s16, 1
      %s22 = ssub.s32 %s16, 2
      %s23 = sadd.s32 %s16, 1
      %s25 = sadd.s32 %s24, 1
      %p28 = scmp.eq.s32.totalorder %s16, 1
      %p29 = scmp.ne.s32.totalorder %s24, %s26
      %p30 = scmp.eq.s32.totalorder %s16, 0
      %p31 = por %p29, %p30
      %p32 = scmp.ne.s32.totalorder %s24, %s26
      %p33 = scmp.eq.s32.totalorder %s21, 1
      %p34 = por %p32, %p33
      %p35 = scmp.ne.s32.totalorder %s26, %s27
      %p36 = scmp.eq.s32.totalorder %s21, 0
      %p37 = por %p35, %p36
      %p38 = scmp.ne.s32.totalorder %s26, %s27
      %p39 = scmp.eq.s32.totalorder %s22, 1
      %p40 = por %p38, %p39
      %p42 = scmp.ne.s32.totalorder %s27, %s41
      %p43 = scmp.eq.s32.totalorder %s22, 0
      %p44 = por %p42, %p43
      %s45 = ssub.s32 %s16, %s23
      %p46 = scmp.eq.s32.totalorder %s45, 0
      %s48 = sadd.s32 %s47, 1
      %s49 = scalar_select %p46, %s47, %s48
      %p52 = pneg %p46
      %p53 = scmp.eq.s32.totalorder %s16, 1
      %p54 = por %p52, %p53
      %p55 = scmp.ne.s32.totalorder %s47, %s50
      %p56 = scmp.eq.s32.totalorder %s16, 0
      %p57 = por %p55, %p56
      %p58 = scmp.ne.s32.totalorder %s47, %s50
      %p59 = scmp.eq.s32.totalorder %s21, 1
      %p60 = por %p58, %p59
      %p61 = scmp.ne.s32.totalorder %s50, %s51
      %p62 = scmp.eq.s32.totalorder %s21, 0
      %p63 = por %p61, %p62
      %p64 = scmp.ne.s32.totalorder %s50, %s51
      %p65 = scmp.eq.s32.totalorder %s22, 1
      %p66 = por %p64, %p65
      %p68 = scmp.ne.s32.totalorder %s51, %s67
      %p69 = scmp.eq.s32.totalorder %s22, 0
      %p70 = por %p68, %p69
      %s72 = sadd.s32 %s71, 1
      %p75 = scmp.eq.s32.totalorder %s16, 1
      %p76 = scmp.ne.s32.totalorder %s71, %s73
      %p77 = scmp.eq.s32.totalorder %s16, 0
      %p78 = por %p76, %p77
      %p79 = scmp.ne.s32.totalorder %s71, %s73
      %p80 = scmp.eq.s32.totalorder %s21, 1
      %p81 = por %p79, %p80
      %p82 = scmp.ne.s32.totalorder %s73, %s74
      %p83 = scmp.eq.s32.totalorder %s21, 0
      %p84 = por %p82, %p83
      %p85 = scmp.ne.s32.totalorder %s73, %s74
      %p86 = scmp.eq.s32.totalorder %s22, 1
      %p87 = por %p85, %p86
      %p89 = scmp.ne.s32.totalorder %s74, %s88
      %p90 = scmp.eq.s32.totalorder %s22, 0
      %p91 = por %p89, %p90
      %s93 = sadd.s32 %s92, 1
      %p96 = scmp.eq.s32.totalorder %s16, 1
      %p97 = scmp.ne.s32.totalorder %s92, %s94
      %p98 = scmp.eq.s32.totalorder %s16, 0
      %p99 = por %p97, %p98
      %p100 = scmp.ne.s32.totalorder %s92, %s94
      %p101 = scmp.eq.s32.totalorder %s21, 1
      %p102 = por %p100, %p101
      %p103 = scmp.ne.s32.totalorder %s94, %s95
      %p104 = scmp.eq.s32.totalorder %s21, 0
      %p105 = por %p103, %p104
      %p106 = scmp.ne.s32.totalorder %s94, %s95
      %p107 = scmp.eq.s32.totalorder %s22, 1
      %p108 = por %p106, %p107
      %p110 = scmp.ne.s32.totalorder %s95, %s109
      %p111 = scmp.eq.s32.totalorder %s22, 0
      %p112 = por %p110, %p111
      %s114 = sadd.s32 %s113, 1
      %p117 = scmp.eq.s32.totalorder %s16, 1
      %p118 = scmp.ne.s32.totalorder %s113, %s115
      %p119 = scmp.eq.s32.totalorder %s16, 0
      %p120 = por %p118, %p119
      %p121 = scmp.ne.s32.totalorder %s113, %s115
      %p122 = scmp.eq.s32.totalorder %s21, 1
      %p123 = por %p121, %p122
      %p124 = scmp.ne.s32.totalorder %s115, %s116
      %p125 = scmp.eq.s32.totalorder %s21, 0
      %p126 = por %p124, %p125
      %p127 = scmp.ne.s32.totalorder %s115, %s116
      %p128 = scmp.eq.s32.totalorder %s22, 1
      %p129 = por %p127, %p128
      %p131 = scmp.ne.s32.totalorder %s116, %s130
      %p132 = scmp.eq.s32.totalorder %s22, 0
      %p133 = por %p131, %p132
      %s135 = sadd.s32 %s134, 1
      %p138 = scmp.eq.s32.totalorder %s16, 1
      %p139 = scmp.ne.s32.totalorder %s134, %s136
      %p140 = scmp.eq.s32.totalorder %s16, 0
      %p141 = por %p139, %p140
      %p142 = scmp.ne.s32.totalorder %s134, %s136
      %p143 = scmp.eq.s32.totalorder %s21, 1
      %p144 = por %p142, %p143
      %p145 = scmp.ne.s32.totalorder %s136, %s137
      %p146 = scmp.eq.s32.totalorder %s21, 0
      %p147 = por %p145, %p146
      %p148 = scmp.ne.s32.totalorder %s136, %s137
      %p149 = scmp.eq.s32.totalorder %s22, 1
      %p150 = por %p148, %p149
      %p152 = scmp.ne.s32.totalorder %s137, %s151
      %p153 = scmp.eq.s32.totalorder %s22, 0
      %p154 = por %p152, %p153
      %s156 = sadd.s32 %s155, 1
      %p159 = scmp.eq.s32.totalorder %s16, 1
      %p160 = scmp.ne.s32.totalorder %s155, %s157
      %p161 = scmp.eq.s32.totalorder %s16, 0
      %p162 = por %p160, %p161
      %p163 = scmp.ne.s32.totalorder %s155, %s157
      %p164 = scmp.eq.s32.totalorder %s21, 1
      %p165 = por %p163, %p164
      %p166 = scmp.ne.s32.totalorder %s157, %s158
      %p167 = scmp.eq.s32.totalorder %s21, 0
      %p168 = por %p166, %p167
      %p169 = scmp.ne.s32.totalorder %s157, %s158
      %p170 = scmp.eq.s32.totalorder %s22, 1
      %p171 = por %p169, %p170
      %p173 = scmp.ne.s32.totalorder %s158, %s172
      %p174 = scmp.eq.s32.totalorder %s22, 0
      %p175 = por %p173, %p174
      %s176 = ssub.s32 %s16, %s23
      %p177 = scmp.eq.s32.totalorder %s176, 0
      %s179 = sadd.s32 %s178, 1
      %s180 = scalar_select %p177, %s178, %s179
      %p183 = pneg %p177
      %p184 = scmp.eq.s32.totalorder %s16, 1
      %p185 = por %p183, %p184
      %p186 = scmp.ne.s32.totalorder %s178, %s181
      %p187 = scmp.eq.s32.totalorder %s16, 0
      %p188 = por %p186, %p187
      %p189 = scmp.ne.s32.totalorder %s178, %s181
      %p190 = scmp.eq.s32.totalorder %s21, 1
      %p191 = por %p189, %p190
      %p192 = scmp.ne.s32.totalorder %s181, %s182
      %p193 = scmp.eq.s32.totalorder %s21, 0
      %p194 = por %p192, %p193
      %p195 = scmp.ne.s32.totalorder %s181, %s182
      %p196 = scmp.eq.s32.totalorder %s22, 1
      %p197 = por %p195, %p196
      %p199 = scmp.ne.s32.totalorder %s182, %s198
      %p200 = scmp.eq.s32.totalorder %s22, 0
      %p201 = por %p199, %p200
      %p202 = scmp.le.s32.totalorder 1, %s16
      %p203 = scmp.lt.s32.totalorder %s16, 3
      %p204 = pnand %p202, %p203
      %p205 = pneg %p204
      // Predicated region
      $region9: #{qvalue_forward.1} parent=5 // pred_check
        _
      $region10: #{qvalue_forward.1} parent=5 // pred_check_branch
        %207 = sbr.rel (%p204) target = $region12
      $region11: #{qvalue_forward.1} parent=5 // pred_region
        %s208 = ssub.s32 %s16, 1
        // Predicated region
        $region13: #{qvalue_forward.1} parent=11 // pred_check
          %p209 = pneg %p37
        $region14: #{qvalue_forward.1} parent=11 // pred_check_branch
          %211 = sbr.rel (%p209) target = $region16
        $region15: #{qvalue_forward.1} parent=11 // pred_region
          _
        $region16: #{qvalue_forward.1} parent=11 // pred_fallthru
          _
        // Predicated region
        $region17: #{qvalue_forward.1} parent=11 // pred_check
          %p212 = pneg %p84
        $region18: #{qvalue_forward.1} parent=11 // pred_check_branch
          %214 = sbr.rel (%p212) target = $region20
        $region19: #{qvalue_forward.1} parent=11 // pred_region
          _
        $region20: #{qvalue_forward.1} parent=11 // pred_fallthru
          _
        // Predicated region
        $region21: #{qvalue_forward.1} parent=11 // pred_check
          %p215 = pneg %p105
        $region22: #{qvalue_forward.1} parent=11 // pred_check_branch
          %217 = sbr.rel (%p215) target = $region24
        $region23: #{qvalue_forward.1} parent=11 // pred_region
          _
        $region24: #{qvalue_forward.1} parent=11 // pred_fallthru
          _
        // Predicated region
        $region25: #{qvalue_forward.1} parent=11 // pred_check
          %p218 = pneg %p126
        $region26: #{qvalue_forward.1} parent=11 // pred_check_branch
          %220 = sbr.rel (%p218) target = $region28
        $region27: #{qvalue_forward.1} parent=11 // pred_region
          _
        $region28: #{qvalue_forward.1} parent=11 // pred_fallthru
          _
        // Predicated region
        $region29: #{qvalue_forward.1} parent=11 // pred_check
          %p221 = pneg %p147
        $region30: #{qvalue_forward.1} parent=11 // pred_check_branch
          %223 = sbr.rel (%p221) target = $region32
        $region31: #{qvalue_forward.1} parent=11 // pred_region
          _
        $region32: #{qvalue_forward.1} parent=11 // pred_fallthru
          _
        // Predicated region
        $region33: #{qvalue_forward.1} parent=11 // pred_check
          %p224 = pneg %p168
        $region34: #{qvalue_forward.1} parent=11 // pred_check_branch
          %226 = sbr.rel (%p224) target = $region36
        $region35: #{qvalue_forward.1} parent=11 // pred_region
          _
        $region36: #{qvalue_forward.1} parent=11 // pred_fallthru
          _
      $region12: #{qvalue_forward.1} parent=5 // pred_fallthru
        _
      %p227 = scmp.lt.s32.totalorder %s16, 2
      // Predicated region
      $region37: #{qvalue_forward.1} parent=5 // pred_check
        %p228 = pneg %p227
      $region38: #{qvalue_forward.1} parent=5 // pred_check_branch
        %230 = sbr.rel (%p228) target = $region40
      $region39: #{qvalue_forward.1} parent=5 // pred_region
        // Predicated region
        $region41: #{qvalue_forward.1} parent=39 // pred_check
          %p231 = pneg %p57
        $region42: #{qvalue_forward.1} parent=39 // pred_check_branch
          %233 = sbr.rel (%p231) target = $region44
        $region43: #{qvalue_forward.1} parent=39 // pred_region
          %s234 = sand.u32 %s47, 1
          %s235 = sand.u32 %s47, 1
          %s236 = smul.addr %s235, 16
          %s237 = scalar_lea.vmem [#allocation4], %s236
          %s238 = smul.addr %s16, 8
          %s239 = scalar_lea.vmem %s1, %s238
          // Predicated region
          $region45: #{qvalue_forward.1} parent=43 // pred_check
            _
          $region46: #{qvalue_forward.1} parent=43 // pred_check_branch
            %241 = sbr.rel (0) target = $region48
          $region47: #{qvalue_forward.1} parent=43 // pred_region
            // Predicated region
            $region49: #{qvalue_forward.1} parent=47 // pred_check
              _
            $region50: #{qvalue_forward.1} parent=47 // pred_check_branch
              %243 = sbr.rel (0) target = $region52
            $region51: #{qvalue_forward.1} parent=47 // pred_region
              // Predicated region
              $region64: #{qvalue_forward.1} parent=51 // pred_check
                _
              $region65: #{qvalue_forward.1} parent=51 // pred_check_branch
                %260 = sbr.rel (0) target = $region67
              $region66: #{qvalue_forward.1} parent=51 // pred_region
                loop: start=0, step=1, limit=1
                $region68: #{qvalue_forward.1} parent=66 // loop_pre_header
                  _
                $region69: #{qvalue_forward.1} parent=66 // loop_header
                  %s262 = sphi 0, %s266
                  %p263 = scmp.ge.s32.totalorder %s262, 1
                  %s267 = sphi %s239, %s239
                  %s268 = sphi %s237, %s237
                $region70: #{qvalue_forward.1} parent=66 // loop_header_branch
                  %265 = sbr.rel (%p263) target = $region74
                $region71: #{qvalue_forward.1} parent=66 // loop_body
                  %v269 = vld [vmem:[%s267] sm:$0xff]
                  %270 = vst [vmem:[%s268] sm:$0xff] %v269
                  %v271 = vld [vmem:[%s267 + $0x10] sm:$0xff]
                  %272 = vst [vmem:[%s268 + $0x8] sm:$0xff] %v271
                $region72: #{qvalue_forward.1} parent=66 // loop_footer
                  %s266 = sadd.s32 1, %s262
                $region73: #{qvalue_forward.1} parent=66 // loop_footer_branch
                  %261 = sbr.rel target = $region69
                $region74: #{qvalue_forward.1} parent=66 // loop_exit
                  _
              $region67: #{qvalue_forward.1} parent=51 // pred_fallthru
                _
              // Predicated region
              $region75: #{qvalue_forward.1} parent=51 // pred_check
                _
              $region76: #{qvalue_forward.1} parent=51 // pred_check_branch
                %274 = sbr.rel target = $region78
              $region77: #{qvalue_forward.1} parent=51 // pred_region
                _
              $region78: #{qvalue_forward.1} parent=51 // pred_fallthru
                _
            $region52: #{qvalue_forward.1} parent=47 // pred_fallthru
              _
            // Predicated region
            $region53: #{qvalue_forward.1} parent=47 // pred_check
              _
            $region54: #{qvalue_forward.1} parent=47 // pred_check_branch
              %245 = sbr.rel target = $region56
            $region55: #{qvalue_forward.1} parent=47 // pred_region
              loop: start=0, step=1, limit=1
              $region57: #{qvalue_forward.1} parent=55 // loop_pre_header
                _
              $region58: #{qvalue_forward.1} parent=55 // loop_header
                %s248 = sphi 0, %s252
                %p249 = scmp.ge.s32.totalorder %s248, 1
                %s253 = sphi %s239, %s239
                %s254 = sphi %s237, %s237
              $region59: #{qvalue_forward.1} parent=55 // loop_header_branch
                %251 = sbr.rel (%p249) target = $region63
              $region60: #{qvalue_forward.1} parent=55 // loop_body
                %v255 = vld [vmem:[%s253] sm:$0xff]
                %256 = vst [vmem:[%s254] sm:$0xff] %v255
                %v257 = vld [vmem:[%s253 + $0x10] sm:$0xff]
                %258 = vst [vmem:[%s254 + $0x8] sm:$0xff] %v257
              $region61: #{qvalue_forward.1} parent=55 // loop_footer
                %s252 = sadd.s32 1, %s248
              $region62: #{qvalue_forward.1} parent=55 // loop_footer_branch
                %247 = sbr.rel target = $region58
              $region63: #{qvalue_forward.1} parent=55 // loop_exit
                _
            $region56: #{qvalue_forward.1} parent=47 // pred_fallthru
              _
          $region48: #{qvalue_forward.1} parent=43 // pred_fallthru
            _
          %275 = vnop
        $region44: #{qvalue_forward.1} parent=39 // pred_fallthru
          _
      $region40: #{qvalue_forward.1} parent=5 // pred_fallthru
        _
      %p276 = scmp.le.s32.totalorder 1, %s16
      %p277 = scmp.lt.s32.totalorder %s16, 3
      %p278 = pnand %p276, %p277
      %p279 = pneg %p278
      // Predicated region
      $region79: #{qvalue_forward.1} parent=5 // pred_check
        _
      $region80: #{qvalue_forward.1} parent=5 // pred_check_branch
        %281 = sbr.rel (%p278) target = $region82
      $region81: #{qvalue_forward.1} parent=5 // pred_region
        %s282 = ssub.s32 %s16, 1
        %s283 = sand.u32 %s50, 1
        %s284 = sand.u32 %s50, 1
        %s285 = smul.addr %s284, 16
        %s286 = scalar_lea.vmem [#allocation4], %s285
        // Predicated region
        $region83: #{qvalue_forward.1} parent=81 // pred_check
          %p287 = pneg %p63
        $region84: #{qvalue_forward.1} parent=81 // pred_check_branch
          %289 = sbr.rel (%p287) target = $region86
        $region85: #{qvalue_forward.1} parent=81 // pred_region
          _
        $region86: #{qvalue_forward.1} parent=81 // pred_fallthru
          _
        %p290 = pneg %p37
        %p291 = pneg %p34
        %s292 = sand.u32 %s50, 1
        %s293 = sand.u32 %s50, 1
        %s294 = smul.addr %s293, 16
        %s295 = scalar_lea.vmem [#allocation4], %s294
        %p296 = pneg %p63
        %p297 = pneg %p60
        %p298 = pneg %p84
        %p299 = pneg %p81
        %p300 = pneg %p105
        %p301 = pneg %p102
        %p302 = pneg %p126
        %p303 = pneg %p123
        %p304 = pneg %p147
        %p305 = pneg %p144
        %p306 = pneg %p168
        %p307 = pneg %p165
        %p308 = pneg %p194
        %p309 = pneg %p191
        %p310 = scmp.lt.s32.totalorder %s21, 1
        %s311 = scalar_select %p310, %s21, 1
        %s312 = scalar_lea.vmem %s7, %s311
        %p313 = scmp.lt.s32.totalorder %s21, 1
        %s314 = scalar_select %p313, %s21, 1
        %s315 = scalar_lea.vmem %s7, %s314
        %s316 = sld [smem:[#allocation2]]
        %v317 = vld [vmem:[%s2] sm:$0xff]
        %v318 = vld [vmem:[%s2 + $0x8] sm:$0xff]
        %v319 = vld [vmem:[%s2 + $0x10] sm:$0xff]
        %v320 = vld [vmem:[%s2 + $0x18] sm:$0xff]
        %v321 = vld [vmem:[%s286] sm:$0xff]
        %v322 = vld [vmem:[%s286 + $0x8] sm:$0x3]
        %vm323 = vcmask 80896
        %v325 = vsel %vm323, %v317, 0
        %v328 = vsel %vm323, %v318, 0
        %v331 = vsel %vm323, %v319, 0
        %v334 = vsel %vm323, %v320, 0
        %vm336 = vcmask 1041408
        %v338 = vsel %vm336, %v322, 0
        %340 = vmatprep.subr.mxu0 0.0
        %341 = vmatpush1.msra.mxu0 %v321
        %342 = vmatprep.subr.mxu0 0.0
        %343 = vmatpush1.msra.mxu0 %v338
        %344 = vmatprep.subr.mxu0 0.0
        %345 = vmatpush1.msra.mxu0 0.0
        %346 = vmatprep.subr.mxu0 0.0
        %347 = vmatpush1.msra.mxu0 0.0
        %348 = vmatprep.subr.mxu0 0.0
        %349 = vmatpush1.msra.mxu0 0.0
        %350 = vmatprep.subr.mxu0 0.0
        %351 = vmatpush1.msra.mxu0 0.0
        %352 = vmatprep.subr.mxu0 0.0
        %353 = vmatpush1.msra.mxu0 0.0
        %354 = vmatprep.subr.mxu0 0.0
        %355 = vmatpush1.msra.mxu0 0.0
        %356 = vmatprep.subr.mxu0 0.0
        %357 = vmatpush1.msra.mxu0 0.0
        %358 = vmatprep.subr.mxu0 0.0
        %359 = vmatpush1.msra.mxu0 0.0
        %360 = vmatprep.subr.mxu0 0.0
        %361 = vmatpush1.msra.mxu0 0.0
        %362 = vmatprep.subr.mxu0 0.0
        %363 = vmatpush1.msra.mxu0 0.0
        %364 = vmatprep.subr.mxu0 0.0
        %365 = vmatpush1.msra.mxu0 0.0
        %366 = vmatprep.subr.mxu0 0.0
        %367 = vmatpush1.msra.mxu0 0.0
        %368 = vmatprep.subr.mxu0 0.0
        %369 = vmatpush1.msra.mxu0 0.0
        %370 = vmatprep.subr.mxu0 0.0
        %371 = vmatpush1.msra.mxu0 0.0
        %372 = vmatprep.subr.mxu0 0.0
        %373 = vmatpush1.msra.mxu0 0.0
        %374 = vmatprep.subr.mxu0 0.0
        %375 = vmatpush1.msra.mxu0 0.0
        %376 = vmatprep.subr.mxu0 0.0
        %377 = vmatpush1.msra.mxu0 0.0
        %378 = vmatprep.subr.mxu0 0.0
        %379 = vmatpush1.msra.mxu0 0.0
        %380 = vmatprep.subr.mxu0 0.0
        %381 = vmatpush1.msra.mxu0 0.0
        %382 = vmatprep.subr.mxu0 0.0
        %383 = vmatpush1.msra.mxu0 0.0
        %384 = vmatprep.subr.mxu0 0.0
        %385 = vmatpush1.msra.mxu0 0.0
        %386 = vmatprep.subr.mxu0 0.0
        %387 = vmatpush1.msra.mxu0 0.0
        %388 = vmatprep.subr.mxu0 0.0
        %389 = vmatpush1.msra.mxu0 0.0
        %390 = vmatprep.subr.mxu0 0.0
        %391 = vmatpush1.msra.mxu0 0.0
        %392 = vmatprep.subr.mxu0 0.0
        %393 = vmatpush1.msra.mxu0 0.0
        %394 = vmatprep.subr.mxu0 0.0
        %395 = vmatpush1.msra.mxu0 0.0
        %396 = vmatprep.subr.mxu0 0.0
        %397 = vmatpush1.msra.mxu0 0.0
        %398 = vmatprep.subr.mxu0 0.0
        %399 = vmatpush1.msra.mxu0 0.0
        %400 = vmatprep.subr.mxu0 0.0
        %401 = vmatpush1.msra.mxu0 0.0
        %402 = vmatprep.subr.mxu0 0.0
        %403 = vmatpush1.msra.mxu0 0.0
        %404 = vmatprep.mubr.f32.mxu0 0.0
        %405 = vmatmul.mubr.f32.gmra.mrb[0].mxu0 %v325
        %v406 = vpop.f32.mrb[0].mxu0
        %v407 = vadd.f32 0.0, %v406
        %v408 = vpop.f32.mrb[0].mxu0
        %409 = vmatprep.mubr.f32.mxu0 0.0
        %410 = vmatmul.mubr.f32.gmra.mrb[0].mxu0 %v328
        %v411 = vpop.f32.mrb[0].mxu0
        %v412 = vadd.f32 0.0, %v411
        %v413 = vpop.f32.mrb[0].mxu0
        %414 = vmatprep.mubr.f32.mxu0 0.0
        %415 = vmatmul.mubr.f32.gmra.mrb[0].mxu0 %v331
        %v416 = vpop.f32.mrb[0].mxu0
        %v417 = vadd.f32 0.0, %v416
        %v418 = vpop.f32.mrb[0].mxu0
        %419 = vmatprep.mubr.f32.mxu0 0.0
        %420 = vmatmul.mubr.f32.gmra.mrb[0].mxu0 %v334
        %v421 = vpop.f32.mrb[0].mxu0
        %v422 = vadd.f32 0.0, %v421
        %v423 = vpop.f32.mrb[0].mxu0
        %424 = vdwg.mxu0
        %vm425 = vcmp.gt.f32.partialorder %v407, 0.0
        %vm426 = vcmp.gt.f32.partialorder %v412, 0.0
        %vm427 = vcmp.gt.f32.partialorder %v417, 0.0
        %vm428 = vcmp.gt.f32.partialorder %v422, 0.0
        %v429 = vstv %s316
        %v430 = vsel %vm425, 1.0, %v429
        %v431 = vsel %vm426, 1.0, %v429
        %v432 = vsel %vm427, 1.0, %v429
        %v433 = vsel %vm428, 1.0, %v429
        %v434 = vmul.f32 %v407, %v430
        %v435 = vmul.f32 %v412, %v431
        %v436 = vmul.f32 %v417, %v432
        %v437 = vmul.f32 %v422, %v433
        %v438 = vld [vmem:[%s3] sm:$0xff]
        %v439 = vld [vmem:[%s3 + $0x8] sm:$0xff]
        %v440 = vld [vmem:[%s3 + $0x10] sm:$0xff]
        %v441 = vld [vmem:[%s3 + $0x18] sm:$0xff]
        %v442 = vld [vmem:[%s4] sm:$0xff]
        %v443 = vld [vmem:[%s4 + $0x8] sm:$0xff]
        %v444 = vld [vmem:[%s4 + $0x10] sm:$0xff]
        %v445 = vld [vmem:[%s4 + $0x18] sm:$0xff]
        %447 = vset.pattern.permute.xlu0 0
        %448 = vperm.xlu0 %447, %v442
        %v449 = vpop.permute.xlu0 %448
        %452 = vset.pattern.permute.xlu0 0
        %453 = vperm.xlu0 %452, %v443
        %v454 = vpop.permute.xlu0 %453
        %457 = vset.pattern.permute.xlu0 0
        %458 = vperm.xlu0 %457, %v444
        %v459 = vpop.permute.xlu0 %458
        %462 = vset.pattern.permute.xlu0 0
        %463 = vperm.xlu0 %462, %v445
        %v464 = vpop.permute.xlu0 %463
        %vm466 = vcmask 261120
        %v468 = vsel %vm466, %v438, 0
        %v471 = vsel %vm466, %v439, 0
        %v474 = vsel %vm466, %v440, 0
        %v477 = vsel %vm466, %v441, 0
        %479 = vmatprep.subr.mxu0 0.0
        %480 = vmatpush1.msra.mxu0 %v434
        %481 = vmatprep.subr.mxu0 0.0
        %482 = vmatpush1.msra.mxu0 %v435
        %483 = vmatprep.subr.mxu0 0.0
        %484 = vmatpush1.msra.mxu0 %v436
        %485 = vmatprep.subr.mxu0 0.0
        %486 = vmatpush1.msra.mxu0 %v437
        %487 = vmatprep.subr.mxu0 0.0
        %488 = vmatpush1.msra.mxu0 0.0
        %489 = vmatprep.subr.mxu0 0.0
        %490 = vmatpush1.msra.mxu0 0.0
        %491 = vmatprep.subr.mxu0 0.0
        %492 = vmatpush1.msra.mxu0 0.0
        %493 = vmatprep.subr.mxu0 0.0
        %494 = vmatpush1.msra.mxu0 0.0
        %495 = vmatprep.subr.mxu0 0.0
        %496 = vmatpush1.msra.mxu0 0.0
        %497 = vmatprep.subr.mxu0 0.0
        %498 = vmatpush1.msra.mxu0 0.0
        %499 = vmatprep.subr.mxu0 0.0
        %500 = vmatpush1.msra.mxu0 0.0
        %501 = vmatprep.subr.mxu0 0.0
        %502 = vmatpush1.msra.mxu0 0.0
        %503 = vmatprep.subr.mxu0 0.0
        %504 = vmatpush1.msra.mxu0 0.0
        %505 = vmatprep.subr.mxu0 0.0
        %506 = vmatpush1.msra.mxu0 0.0
        %507 = vmatprep.subr.mxu0 0.0
        %508 = vmatpush1.msra.mxu0 0.0
        %509 = vmatprep.subr.mxu0 0.0
        %510 = vmatpush1.msra.mxu0 0.0
        %511 = vmatprep.subr.mxu0 0.0
        %512 = vmatpush1.msra.mxu0 0.0
        %513 = vmatprep.subr.mxu0 0.0
        %514 = vmatpush1.msra.mxu0 0.0
        %515 = vmatprep.subr.mxu0 0.0
        %516 = vmatpush1.msra.mxu0 0.0
        %517 = vmatprep.subr.mxu0 0.0
        %518 = vmatpush1.msra.mxu0 0.0
        %519 = vmatprep.subr.mxu0 0.0
        %520 = vmatpush1.msra.mxu0 0.0
        %521 = vmatprep.subr.mxu0 0.0
        %522 = vmatpush1.msra.mxu0 0.0
        %523 = vmatprep.subr.mxu0 0.0
        %524 = vmatpush1.msra.mxu0 0.0
        %525 = vmatprep.subr.mxu0 0.0
        %526 = vmatpush1.msra.mxu0 0.0
        %527 = vmatprep.subr.mxu0 0.0
        %528 = vmatpush1.msra.mxu0 0.0
        %529 = vmatprep.subr.mxu0 0.0
        %530 = vmatpush1.msra.mxu0 0.0
        %531 = vmatprep.subr.mxu0 0.0
        %532 = vmatpush1.msra.mxu0 0.0
        %533 = vmatprep.subr.mxu0 0.0
        %534 = vmatpush1.msra.mxu0 0.0
        %535 = vmatprep.subr.mxu0 0.0
        %536 = vmatpush1.msra.mxu0 0.0
        %537 = vmatprep.subr.mxu0 0.0
        %538 = vmatpush1.msra.mxu0 0.0
        %539 = vmatprep.subr.mxu0 0.0
        %540 = vmatpush1.msra.mxu0 0.0
        %541 = vmatprep.subr.mxu0 0.0
        %542 = vmatpush1.msra.mxu0 0.0
        %543 = vmatprep.mubr.f32.mxu0 0.0
        %544 = vmatmul.mubr.f32.gmra.mrb[0].mxu0 %v468
        %v545 = vpop.f32.mrb[0].mxu0
        %v546 = vadd.f32 %v449, %v545
        %v547 = vpop.f32.mrb[0].mxu0
        %548 = vmatprep.mubr.f32.mxu0 0.0
        %549 = vmatmul.mubr.f32.gmra.mrb[0].mxu0 %v471
        %v550 = vpop.f32.mrb[0].mxu0
        %v551 = vadd.f32 %v454, %v550
        %v552 = vpop.f32.mrb[0].mxu0
        %553 = vmatprep.mubr.f32.mxu0 0.0
        %554 = vmatmul.mubr.f32.gmra.mrb[0].mxu0 %v474
        %v555 = vpop.f32.mrb[0].mxu0
        %v556 = vadd.f32 %v459, %v555
        %v557 = vpop.f32.mrb[0].mxu0
        %558 = vmatprep.mubr.f32.mxu0 0.0
        %559 = vmatmul.mubr.f32.gmra.mrb[0].mxu0 %v477
        %v560 = vpop.f32.mrb[0].mxu0
        %v561 = vadd.f32 %v464, %v560
        %v562 = vpop.f32.mrb[0].mxu0
        %563 = vdwg.mxu0
        %vm564 = vcmp.gt.f32.partialorder %v546, 0.0
        %vm565 = vcmp.gt.f32.partialorder %v551, 0.0
        %vm566 = vcmp.gt.f32.partialorder %v556, 0.0
        %vm567 = vcmp.gt.f32.partialorder %v561, 0.0
        %v568 = vsel %vm564, 1.0, %v429
        %v569 = vsel %vm565, 1.0, %v429
        %v570 = vsel %vm566, 1.0, %v429
        %v571 = vsel %vm567, 1.0, %v429
        %v572 = vmul.f32 %v546, %v568
        %v573 = vmul.f32 %v551, %v569
        %v574 = vmul.f32 %v556, %v570
        %v575 = vmul.f32 %v561, %v571
        %v576 = vld [vmem:[%s5] sm:$0x1]
        %v577 = vld [vmem:[#allocation3] sm:$0x1]
        %579 = vset.pattern.permute.xlu0 0
        %580 = vperm.xlu0 %579, %v577
        %v581 = vpop.permute.xlu0 %580
        %v583 = vlaneseq
        %v584 = vshrl.u32 %v583, 7
        %v585 = vsub.s32 0, %v584
        %v586 = vrot.slane %v581, %v585
        %v588 = vsel %vm466, %v576, 0
        %590 = vmatprep.subr.mxu0 0.0
        %591 = vmatpush1.msra.mxu0 %v572
        %592 = vmatprep.subr.mxu0 0.0
        %593 = vmatpush1.msra.mxu0 %v573
        %594 = vmatprep.subr.mxu0 0.0
        %595 = vmatpush1.msra.mxu0 %v574
        %596 = vmatprep.subr.mxu0 0.0
        %597 = vmatpush1.msra.mxu0 %v575
        %598 = vmatprep.subr.mxu0 0.0
        %599 = vmatpush1.msra.mxu0 0.0
        %600 = vmatprep.subr.mxu0 0.0
        %601 = vmatpush1.msra.mxu0 0.0
        %602 = vmatprep.subr.mxu0 0.0
        %603 = vmatpush1.msra.mxu0 0.0
        %604 = vmatprep.subr.mxu0 0.0
        %605 = vmatpush1.msra.mxu0 0.0
        %606 = vmatprep.subr.mxu0 0.0
        %607 = vmatpush1.msra.mxu0 0.0
        %608 = vmatprep.subr.mxu0 0.0
        %609 = vmatpush1.msra.mxu0 0.0
        %610 = vmatprep.subr.mxu0 0.0
        %611 = vmatpush1.msra.mxu0 0.0
        %612 = vmatprep.subr.mxu0 0.0
        %613 = vmatpush1.msra.mxu0 0.0
        %614 = vmatprep.subr.mxu0 0.0
        %615 = vmatpush1.msra.mxu0 0.0
        %616 = vmatprep.subr.mxu0 0.0
        %617 = vmatpush1.msra.mxu0 0.0
        %618 = vmatprep.subr.mxu0 0.0
        %619 = vmatpush1.msra.mxu0 0.0
        %620 = vmatprep.subr.mxu0 0.0
        %621 = vmatpush1.msra.mxu0 0.0
        %622 = vmatprep.subr.mxu0 0.0
        %623 = vmatpush1.msra.mxu0 0.0
        %624 = vmatprep.subr.mxu0 0.0
        %625 = vmatpush1.msra.mxu0 0.0
        %626 = vmatprep.subr.mxu0 0.0
        %627 = vmatpush1.msra.mxu0 0.0
        %628 = vmatprep.subr.mxu0 0.0
        %629 = vmatpush1.msra.mxu0 0.0
        %630 = vmatprep.subr.mxu0 0.0
        %631 = vmatpush1.msra.mxu0 0.0
        %632 = vmatprep.subr.mxu0 0.0
        %633 = vmatpush1.msra.mxu0 0.0
        %634 = vmatprep.subr.mxu0 0.0
        %635 = vmatpush1.msra.mxu0 0.0
        %636 = vmatprep.subr.mxu0 0.0
        %637 = vmatpush1.msra.mxu0 0.0
        %638 = vmatprep.subr.mxu0 0.0
        %639 = vmatpush1.msra.mxu0 0.0
        %640 = vmatprep.subr.mxu0 0.0
        %641 = vmatpush1.msra.mxu0 0.0
        %642 = vmatprep.subr.mxu0 0.0
        %643 = vmatpush1.msra.mxu0 0.0
        %644 = vmatprep.subr.mxu0 0.0
        %645 = vmatpush1.msra.mxu0 0.0
        %646 = vmatprep.subr.mxu0 0.0
        %647 = vmatpush1.msra.mxu0 0.0
        %648 = vmatprep.subr.mxu0 0.0
        %649 = vmatpush1.msra.mxu0 0.0
        %650 = vmatprep.subr.mxu0 0.0
        %651 = vmatpush1.msra.mxu0 0.0
        %652 = vmatprep.subr.mxu0 0.0
        %653 = vmatpush1.msra.mxu0 0.0
        %654 = vmatprep.mubr.f32.mxu0 0.0
        %655 = vmatmul.mubr.f32.gmra.mrb[0].mxu0 %v588
        %v656 = vpop.f32.mrb[0].mxu0
        %v657 = vadd.f32 %v586, %v656
        %v658 = vpop.f32.mrb[0].mxu0
        %659 = vdwg.mxu0
        %660 = vst [vmem:[%s315] sm:$0x1] %v657
        %p661 = scmp.lt.s32.totalorder %s21, 1
        %s662 = scalar_select %p661, %s21, 1
        %s663 = scalar_lea.vmem %s7, %s662
        // Predicated region
        $region87: #{qvalue_forward.1} parent=81 // pred_check
          %p664 = pneg %p191
        $region88: #{qvalue_forward.1} parent=81 // pred_check_branch
          %666 = sbr.rel (%p664) target = $region90
        $region89: #{qvalue_forward.1} parent=81 // pred_region
          _
        $region90: #{qvalue_forward.1} parent=81 // pred_fallthru
          _
      $region82: #{qvalue_forward.1} parent=5 // pred_fallthru
        _
      %p667 = scmp.le.s32.totalorder 2, %s16
      // Predicated region
      $region91: #{qvalue_forward.1} parent=5 // pred_check
        %p668 = pneg %p667
      $region92: #{qvalue_forward.1} parent=5 // pred_check_branch
        %670 = sbr.rel (%p668) target = $region94
      $region93: #{qvalue_forward.1} parent=5 // pred_region
        %s671 = ssub.s32 %s16, 2
        // Predicated region
        $region95: #{qvalue_forward.1} parent=93 // pred_check
          %p672 = pneg %p197
        $region96: #{qvalue_forward.1} parent=93 // pred_check_branch
          %674 = sbr.rel (%p672) target = $region98
        $region97: #{qvalue_forward.1} parent=93 // pred_region
          %p675 = scmp.lt.s32.totalorder %s22, 1
          %s676 = scalar_select %p675, %s22, 1
          %s677 = scalar_lea.vmem %s7, %s676
        $region98: #{qvalue_forward.1} parent=93 // pred_fallthru
          _
      $region94: #{qvalue_forward.1} parent=5 // pred_fallthru
        _
    $region6: #{qvalue_forward.1} parent=1 // loop_footer
      %s20 = sadd.s32 1, %s16
    $region7: #{qvalue_forward.1} parent=1 // loop_footer_branch
      %15 = sbr.rel target = $region3
    $region8: #{qvalue_forward.1} parent=1 // loop_exit
      _

</llo_original>
